<compile_context>
chip_gen: v6e
topology: v6e:2x2x1
jax: 0.10.0
libtpu: 0.0.40
codegen_flags: <defaults>
</compile_context>

<pallas_src>
import math

import numpy as np
import jax
import jax.numpy as jnp
from jax.experimental import pallas as pl
from jax.experimental.pallas import tpu as pltpu


_CUBIC_A = -0.75  # PyTorch's bicubic coefficient.


# ----------------------------------------------------------------------------
# Host-side construction of the interpolation matrices (PyTorch semantics).
# ----------------------------------------------------------------------------
def _cubic_taps(in_size, out_size, align_corners):
    """PyTorch-compatible bicubic taps: (idx[4, out] clamped, w[4, out])."""
    o = np.arange(out_size, dtype=np.float64)
    if align_corners and out_size > 1:
        src = o * (in_size - 1) / (out_size - 1)
    else:
        src = (o + 0.5) * (in_size / out_size) - 0.5
    x0 = np.floor(src)
    t = src - x0
    A = _CUBIC_A

    def cc1(x):  # |x| <= 1
        return ((A + 2.0) * x - (A + 3.0)) * x * x + 1.0

    def cc2(x):  # 1 < |x| < 2
        return ((A * x - 5.0 * A) * x + 8.0 * A) * x - 4.0 * A

    w = np.stack([cc2(t + 1.0), cc1(t), cc1(1.0 - t), cc2(2.0 - t)], axis=0)
    base = x0.astype(np.int64) - 1
    idx = np.stack(
        [np.clip(base + k, 0, in_size - 1) for k in range(4)], axis=0)
    return idx, w


def _linear_taps(in_size, out_size, align_corners):
    """PyTorch-compatible bilinear taps: (idx[2, out] clamped, w[2, out])."""
    o = np.arange(out_size, dtype=np.float64)
    if align_corners and out_size > 1:
        src = o * (in_size - 1) / (out_size - 1)
    else:
        src = np.maximum((o + 0.5) * (in_size / out_size) - 0.5, 0.0)
    x0 = np.minimum(np.floor(src).astype(np.int64), in_size - 1)
    t = src - x0
    x1 = np.minimum(x0 + 1, in_size - 1)
    return np.stack([x0, x1], axis=0), np.stack([1.0 - t, t], axis=0)


def _interp_matrix(in_size, out_size, mode, align_corners):
    """Dense (out_size, in_size) interpolation matrix, PyTorch semantics."""
    if mode == "bicubic":
        idx, w = _cubic_taps(in_size, out_size, align_corners)
    elif mode == "bilinear":
        idx, w = _linear_taps(in_size, out_size, align_corners)
    else:
        # TODO(synk): 'nearest' / 'area' interpolate modes not implemented.
        raise NotImplementedError(f"mode={mode} not implemented")
    U = np.zeros((out_size, in_size), dtype=np.float64)
    o = np.arange(out_size)
    for k in range(idx.shape[0]):
        np.add.at(U, (o, idx[k]), w[k])  # add: clamped taps may collide
    return U.astype(np.float32)


# ----------------------------------------------------------------------------
# Kernel
# ----------------------------------------------------------------------------
def _make_upsample_kernel(bc, H, W, Ho, Wo, compute_dtype):
    # Folding the width matmul merges (bc, H) -> bc*H rows; that reshape is
    # layout-free only when H is a multiple of the sublane packing.
    sublane = 8 if jnp.dtype(compute_dtype).itemsize == 4 else 16
    fold_width = (H % sublane == 0)

    def kernel(x_ref, uwT_ref, uh_ref, o_ref):
        # x_ref:  (bc, H, W)    block of batch*channel planes
        # uwT_ref:(W, Wo)       VMEM-resident width-interp matrix (transposed)
        # uh_ref: (Ho, H)       VMEM-resident height-interp matrix
        # o_ref:  (bc, Ho, Wo)
        uwT = uwT_ref[...]
        uh = uh_ref[...]
        x = x_ref[...]
        if x.dtype != compute_dtype:
            x = x.astype(compute_dtype)

        # TODO(synk): if per-axis factors ever differ, pick the matmul order
        # minimizing min(H*Wo, Ho*W); for the module's symmetric factor they
        # are equal, so width-first is used unconditionally.
        if fold_width:
            # One big MXU matmul over the whole block: M = bc*H.
            t = jnp.dot(x.reshape(bc * H, W), uwT,
                        preferred_element_type=jnp.float32)        # (bc*H, Wo)
            t = t.reshape(bc, H, Wo).astype(compute_dtype)
            # Height pass: per plane, result stored straight to the output
            # block (live range ends at the store, no relayout needed).
            for b in range(bc):
                y = jnp.dot(uh, t[b], preferred_element_type=jnp.float32)
                o_ref[b] = y.astype(o_ref.dtype)
        else:
            for b in range(bc):
                tb = jnp.dot(x[b], uwT,
                             preferred_element_type=jnp.float32)
                tb = tb.astype(compute_dtype)
                y = jnp.dot(uh, tb, preferred_element_type=jnp.float32)
                o_ref[b] = y.astype(o_ref.dtype)

    return kernel


def _pick_bc_block(BC, H, W, Ho, Wo, in_itemsize, out_itemsize,
                   budget_bytes=20 << 20, min_steps=4):
    """Planes per grid step from a VMEM byte budget (not a divisor list)."""
    # Double-buffered input + output blocks plus the f32 width-pass
    # intermediate (internal scratch), per plane.
    per_plane_vmem = (2 * (H * W * in_itemsize + Ho * Wo * out_itemsize)
                      + H * Wo * 4)
    bc = max(1, min(BC, budget_bytes // per_plane_vmem))
    # Keep >= min_steps grid steps so both v7x TensorCores get >= 2 pipelined
    # steps on the single 'parallel' axis.
    if BC >= min_steps:
        bc = min(bc, -(-BC // min_steps))
    return int(max(1, bc))


def upsample_layer_forward(x_nchw, *, mode="bicubic", size=None, factor=2,
                           align_corners=False, bc_block=None):
    """Fused forward of UpSampleLayer (default: bicubic x2, align_corners=False).

    x_nchw : (N, C, H, W)
    returns: (N, C, H_out, W_out), same dtype as input.
    """
    N, C, H, W = x_nchw.shape
    if size is not None:
        if isinstance(size, (tuple, list)):
            Ho, Wo = int(size[0]), int(size[1])
        else:
            Ho = Wo = int(size)
    else:
        Ho, Wo = int(math.floor(H * factor)), int(math.floor(W * factor))

    # bf16 inputs keep bf16 MXU operands (f32 accumulation); f32 inputs keep
    # the fully f32 path so accuracy matches the reference at 1e-5.
    compute_dtype = (jnp.bfloat16 if x_nchw.dtype == jnp.bfloat16
                     else jnp.float32)

    uh = jnp.asarray(_interp_matrix(H, Ho, mode, align_corners),
                     dtype=compute_dtype)                           # (Ho, H)
    uwT = jnp.asarray(_interp_matrix(W, Wo, mode, align_corners).T,
                      dtype=compute_dtype)                          # (W, Wo)

    BC = N * C
    itemsize = jnp.dtype(x_nchw.dtype).itemsize
    if bc_block is None:
        bc_block = _pick_bc_block(BC, H, W, Ho, Wo, itemsize, itemsize)
    bc_block = int(max(1, min(bc_block, BC)))

    # Pad the plane axis instead of falling back to bc_block=1 for odd N*C.
    n_steps = -(-BC // bc_block)
    BC_pad = n_steps * bc_block
    x_b = x_nchw.reshape(BC, H, W)            # free reshape; stays NCHW order
    if BC_pad != BC:
        x_b = jnp.pad(x_b, ((0, BC_pad - BC), (0, 0), (0, 0)))

    kernel = _make_upsample_kernel(bc_block, H, W, Ho, Wo, compute_dtype)

    out = pl.pallas_call(
        kernel,
        out_shape=jax.ShapeDtypeStruct((BC_pad, Ho, Wo), x_nchw.dtype),
        grid_spec=pltpu.PrefetchScalarGridSpec(
            num_scalar_prefetch=0,
            grid=(n_steps,),
            in_specs=[
                # Activations: block of planes, full spatial extent per step.
                pl.BlockSpec((bc_block, H, W), lambda i: (i, 0, 0)),
                # Interpolation matrices: whole-array VMEM residents (no
                # pipeline double-buffering for data that never changes).
                pl.BlockSpec(memory_space=pltpu.MemorySpace.VMEM),
                pl.BlockSpec(memory_space=pltpu.MemorySpace.VMEM),
            ],
            out_specs=pl.BlockSpec((bc_block, Ho, Wo), lambda i: (i, 0, 0)),
        ),
        compiler_params=pltpu.CompilerParams(
            dimension_semantics=("parallel",),
            vmem_limit_bytes=32 * 1024 * 1024),
    )(x_b, uwT, uh)

    return out[:BC].reshape(N, C, Ho, Wo)


# ----------------------------------------------------------------------------
# Plain-JAX reference (gather form) reproducing torch.nn.functional.interpolate
# ----------------------------------------------------------------------------
def _reference_upsample_bicubic(x_nchw, Ho, Wo, align_corners=False):
    N, C, H, W = x_nchw.shape
    idx_w, w_w = _cubic_taps(W, Wo, align_corners)
    idx_h, w_h = _cubic_taps(H, Ho, align_corners)
    x = x_nchw.astype(jnp.float32)
    xw = sum(x[..., idx_w[k]] * jnp.asarray(w_w[k], jnp.float32)
             for k in range(4))                                     # (N,C,H,Wo)
    y = sum(xw[:, :, idx_h[k], :]
            * jnp.asarray(w_h[k], jnp.float32)[None, None, :, None]
            for k in range(4))                                      # (N,C,Ho,Wo)
    return y


if __name__ == "__main__":
    # Small shapes consistent with the module's forward (NCHW image tensor).
    N, C, H, W = 2, 4, 16, 16
    key = jax.random.PRNGKey(0)
    x = jax.random.normal(key, (N, C, H, W), dtype=jnp.float32)

    # f32 path (f32 weights, f32 accumulation) — tight tolerance.
    y = upsample_layer_forward(x, mode="bicubic", factor=2, align_corners=False)
    y = jax.block_until_ready(y)
    y_ref = _reference_upsample_bicubic(x, 2 * H, 2 * W, align_corners=False)
    assert y.shape == (N, C, 2 * H, 2 * W), y.shape
    err = float(jnp.max(jnp.abs(y.astype(jnp.float32) - y_ref)))
    assert jnp.allclose(y.astype(jnp.float32), y_ref, atol=1e-5, rtol=1e-5), (
        f"f32 mismatch vs reference (max abs err {err})")

    # bf16 path (bf16 MXU operands, f32 accumulation) — loose tolerance.
    xb = x.astype(jnp.bfloat16)
    yb = upsample_layer_forward(xb, mode="bicubic", factor=2,
                                align_corners=False)
    yb = jax.block_until_ready(yb)
    assert yb.dtype == jnp.bfloat16
    yb_ref = _reference_upsample_bicubic(xb.astype(jnp.float32), 2 * H, 2 * W)
    errb = float(jnp.max(jnp.abs(yb.astype(jnp.float32) - yb_ref)))
    assert jnp.allclose(yb.astype(jnp.float32), yb_ref, atol=1e-1, rtol=1e-1), (
        f"bf16 mismatch vs reference (max abs err {errb})")

    print("KERNEL_OK")
</pallas_src>

<mosaic_0001>
module attributes {stable_mosaic.version = 11 : i64} {
  func.func @kernel(%arg0: i32, %arg1: memref<2x16x16xf32, #tpu.memory_space<vmem>>, %arg2: memref<16x32xf32, #tpu.memory_space<vmem>>, %arg3: memref<32x16xf32, #tpu.memory_space<vmem>>, %arg4: memref<2x32x32xf32, #tpu.memory_space<vmem>>) attributes {dimension_semantics = [#tpu.dimension_semantics<parallel>], iteration_bounds = array<i64: 4>, scalar_prefetch = 0 : i64, scratch_operands = 0 : i64, tpu.core_type = #tpu.core_type<tc>, window_params = [{transform_indices = @transform_0, window_bounds = array<i64: 2, 16, 16>}, {pipeline_mode = #tpu.pipeline_mode<synchronous>, transform_indices = @transform_1, window_bounds = array<i64: 16, 32>}, {pipeline_mode = #tpu.pipeline_mode<synchronous>, transform_indices = @transform_2, window_bounds = array<i64: 32, 16>}, {transform_indices = @transform_3, window_bounds = array<i64: 2, 32, 32>}]} {
    %c0 = arith.constant 0 : index
    %c0_0 = arith.constant 0 : index
    %0 = vector.load %arg2[%c0, %c0_0] : memref<16x32xf32, #tpu.memory_space<vmem>>, vector<16x32xf32>
    %c0_1 = arith.constant 0 : index
    %c0_2 = arith.constant 0 : index
    %1 = vector.load %arg3[%c0_1, %c0_2] : memref<32x16xf32, #tpu.memory_space<vmem>>, vector<32x16xf32>
    %c0_3 = arith.constant 0 : index
    %c0_4 = arith.constant 0 : index
    %c0_5 = arith.constant 0 : index
    %2 = vector.load %arg1[%c0_3, %c0_4, %c0_5] : memref<2x16x16xf32, #tpu.memory_space<vmem>>, vector<2x16x16xf32>
    %3 = vector.shape_cast %2 : vector<2x16x16xf32> to vector<32x16xf32>
    %cst = arith.constant dense<0.000000e+00> : vector<32x32xf32>
    %4 = tpu.matmul %3, %0, %cst {dimension_numbers = #tpu.dot_dimension_numbers<[1], [0], [0], [1], [0, 0, 1, 1], [], []>} : vector<32x16xf32>, vector<16x32xf32>, vector<32x32xf32> -> vector<32x32xf32>
    %5 = vector.shape_cast %4 : vector<32x32xf32> to vector<2x16x32xf32>
    %6 = vector.extract_strided_slice %5 {offsets = [0, 0, 0], sizes = [1, 16, 32], strides = [1, 1, 1]} : vector<2x16x32xf32> to vector<1x16x32xf32>
    %7 = vector.shape_cast %6 : vector<1x16x32xf32> to vector<16x32xf32>
    %cst_6 = arith.constant dense<0.000000e+00> : vector<32x32xf32>
    %8 = tpu.matmul %1, %7, %cst_6 {dimension_numbers = #tpu.dot_dimension_numbers<[1], [0], [0], [1], [0, 0, 1, 1], [], []>} : vector<32x16xf32>, vector<16x32xf32>, vector<32x32xf32> -> vector<32x32xf32>
    %c0_7 = arith.constant 0 : index
    %c0_8 = arith.constant 0 : index
    %c0_9 = arith.constant 0 : index
    %9 = vector.load %arg4[%c0_7, %c0_8, %c0_9] : memref<2x32x32xf32, #tpu.memory_space<vmem>>, vector<1x32x32xf32>
    %10 = vector.shape_cast %9 : vector<1x32x32xf32> to vector<32x32xf32>
    %11 = vector.shape_cast %8 : vector<32x32xf32> to vector<1x32x32xf32>
    tpu.vector_store %arg4[%c0_7, %c0_8, %c0_9], %11 {strides = array<i32>} : memref<2x32x32xf32, #tpu.memory_space<vmem>>, vector<1x32x32xf32>,
    %12 = vector.extract_strided_slice %5 {offsets = [1, 0, 0], sizes = [1, 16, 32], strides = [1, 1, 1]} : vector<2x16x32xf32> to vector<1x16x32xf32>
    %13 = vector.shape_cast %12 : vector<1x16x32xf32> to vector<16x32xf32>
    %cst_10 = arith.constant dense<0.000000e+00> : vector<32x32xf32>
    %14 = tpu.matmul %1, %13, %cst_10 {dimension_numbers = #tpu.dot_dimension_numbers<[1], [0], [0], [1], [0, 0, 1, 1], [], []>} : vector<32x16xf32>, vector<16x32xf32>, vector<32x32xf32> -> vector<32x32xf32>
    %c1 = arith.constant 1 : index
    %c0_11 = arith.constant 0 : index
    %c0_12 = arith.constant 0 : index
    %15 = vector.load %arg4[%c1, %c0_11, %c0_12] : memref<2x32x32xf32, #tpu.memory_space<vmem>>, vector<1x32x32xf32>
    %16 = vector.shape_cast %15 : vector<1x32x32xf32> to vector<32x32xf32>
    %17 = vector.shape_cast %14 : vector<32x32xf32> to vector<1x32x32xf32>
    tpu.vector_store %arg4[%c1, %c0_11, %c0_12], %17 {strides = array<i32>} : memref<2x32x32xf32, #tpu.memory_space<vmem>>, vector<1x32x32xf32>,
    return
  }
  func.func @transform_0(%arg0: i32) -> (i32, i32, i32) {
    %c0_i32 = arith.constant 0 : i32
    %c0_i32_0 = arith.constant 0 : i32
    %c0_i32_1 = arith.constant 0 : i32
    return %arg0, %c0_i32, %c0_i32_0 : i32, i32, i32
  }
  func.func @transform_1(%arg0: i32) -> (i32, i32) {
    %c0_i32 = arith.constant 0 : i32
    %c0_i32_0 = arith.constant 0 : i32
    %c0_i32_1 = arith.constant 0 : i32
    return %c0_i32, %c0_i32_0 : i32, i32
  }
  func.func @transform_2(%arg0: i32) -> (i32, i32) {
    %c0_i32 = arith.constant 0 : i32
    %c0_i32_0 = arith.constant 0 : i32
    %c0_i32_1 = arith.constant 0 : i32
    return %c0_i32, %c0_i32_0 : i32, i32
  }
  func.func @transform_3(%arg0: i32) -> (i32, i32, i32) {
    %c0_i32 = arith.constant 0 : i32
    %c0_i32_0 = arith.constant 0 : i32
    %c0_i32_1 = arith.constant 0 : i32
    return %arg0, %c0_i32, %c0_i32_0 : i32, i32, i32
  }
}

</mosaic_0001>

<llo_original>
// kernel: tpu_custom_call.1
$region0: #{tpu_custom_call.1}
  #allocation0 [shape = 'u32[]', space=smem, size = 0x4, offset = 0x4, fixed_abs, tag = 'smem constant byte address 0x4 - core index']
  #allocation1 [shape = 'u32[144,128]{1,0:T(1,128)}', space=vmem, size = 0x12000, scoped, tag = 'internal scratch']
  %s0 = inlined_call_operand.hbm [shape: f32[8,16,16], index: 0, kind: input, shape index: {}]
  %s1 = inlined_call_operand.vmem [shape: f32[16,32], index: 1, kind: input, shape index: {}]
  %s2 = inlined_call_operand.vmem [shape: f32[32,16], index: 2, kind: input, shape index: {}]
  %s3 = inlined_call_operand.hbm [shape: f32[8,32,32], index: 3, kind: output, shape index: {}]
  %s4 = sld [smem:[#allocation0]]
  $region49: #{tpu_custom_call.1} parent=0
    _
  %s6 = ssub.s32 1, %s4
  %s7 = scalar_select 0, %s6, %s4
  $region1: #{tpu_custom_call.1} parent=0
    #allocation2 [shape = 'u8[32768]{0}', space=vmem, size = 0x8000, scoped, tag = 'input window, operand 0']
    #allocation3 [shape = 's32[2]{0}', space=sflag, size = 0x8, scoped, tag = 'scoped memory for tpu_custom_call.1']
    #allocation4 [shape = 's32[2]{0}', space=sflag, size = 0x8, scoped, tag = 'scoped memory for tpu_custom_call.1']
    #allocation5 [shape = 'u8[65536]{0}', space=vmem, size = 0x10000, scoped, tag = 'output window, operand 0']
    %8 = vsyncpa [#allocation3], 0
    %s9 = scalar_lea.sflag [#allocation3], 1
    %10 = vsyncpa %s9, 0
    %11 = vsyncpa [#allocation4], 0
    %s12 = scalar_lea.sflag [#allocation4], 1
    %13 = vsyncpa %s12, 0
    loop: start=0, step=1, limit=6
    $region2: #{tpu_custom_call.1} parent=1 // loop_pre_header
      _
    $region3: #{tpu_custom_call.1} parent=1 // loop_header
      %s15 = sphi 0, %s19
      %p16 = scmp.ge.s32.totalorder %s15, 6
      %s25 = sphi 0, %s27
      %s28 = sphi 0, %s25
      %s29 = sphi 0, %s28
      %s45 = sphi 0, %s29
      %s49 = sphi 0, %s49
      %s51 = sphi 0, %s49
      %s52 = sphi 0, %s51
      %s66 = sphi 0, %s52
      %s70 = sphi 0, %s70
      %s72 = sphi 0, %s70
      %s73 = sphi 0, %s72
      %s87 = sphi 0, %s73
      %s93 = sphi 0, %s95
      %s96 = sphi 0, %s93
      %s97 = sphi 0, %s96
      %s113 = sphi 0, %s97
    $region4: #{tpu_custom_call.1} parent=1 // loop_header_branch
      %18 = sbr.rel (%p16) target = $region8
    $region5: #{tpu_custom_call.1} parent=1 // loop_body
      %s20 = ssub.s32 %s15, 1
      %s21 = ssub.s32 %s15, 2
      %s22 = sadd.s32 %s15, 1
      %s23 = ssub.s32 %s15, %s22
      %p24 = scmp.eq.s32.totalorder %s23, 0
      %s26 = sadd.s32 %s25, 1
      %s27 = scalar_select %p24, %s25, %s26
      %p30 = pneg %p24
      %p31 = scmp.eq.s32.totalorder %s15, 3
      %p32 = por %p30, %p31
      %p33 = scmp.ne.s32.totalorder %s25, %s28
      %p34 = scmp.eq.s32.totalorder %s15, 0
      %p35 = por %p33, %p34
      %p36 = scmp.ne.s32.totalorder %s25, %s28
      %p37 = scmp.eq.s32.totalorder %s20, 3
      %p38 = por %p36, %p37
      %p39 = scmp.ne.s32.totalorder %s28, %s29
      %p40 = scmp.eq.s32.totalorder %s20, 0
      %p41 = por %p39, %p40
      %p42 = scmp.ne.s32.totalorder %s28, %s29
      %p43 = scmp.eq.s32.totalorder %s21, 3
      %p44 = por %p42, %p43
      %p46 = scmp.ne.s32.totalorder %s29, %s45
      %p47 = scmp.eq.s32.totalorder %s21, 0
      %p48 = por %p46, %p47
      %s50 = sadd.s32 %s49, 1
      %p53 = scmp.eq.s32.totalorder %s15, 3
      %p54 = scmp.ne.s32.totalorder %s49, %s51
      %p55 = scmp.eq.s32.totalorder %s15, 0
      %p56 = por %p54, %p55
      %p57 = scmp.ne.s32.totalorder %s49, %s51
      %p58 = scmp.eq.s32.totalorder %s20, 3
      %p59 = por %p57, %p58
      %p60 = scmp.ne.s32.totalorder %s51, %s52
      %p61 = scmp.eq.s32.totalorder %s20, 0
      %p62 = por %p60, %p61
      %p63 = scmp.ne.s32.totalorder %s51, %s52
      %p64 = scmp.eq.s32.totalorder %s21, 3
      %p65 = por %p63, %p64
      %p67 = scmp.ne.s32.totalorder %s52, %s66
      %p68 = scmp.eq.s32.totalorder %s21, 0
      %p69 = por %p67, %p68
      %s71 = sadd.s32 %s70, 1
      %p74 = scmp.eq.s32.totalorder %s15, 3
      %p75 = scmp.ne.s32.totalorder %s70, %s72
      %p76 = scmp.eq.s32.totalorder %s15, 0
      %p77 = por %p75, %p76
      %p78 = scmp.ne.s32.totalorder %s70, %s72
      %p79 = scmp.eq.s32.totalorder %s20, 3
      %p80 = por %p78, %p79
      %p81 = scmp.ne.s32.totalorder %s72, %s73
      %p82 = scmp.eq.s32.totalorder %s20, 0
      %p83 = por %p81, %p82
      %p84 = scmp.ne.s32.totalorder %s72, %s73
      %p85 = scmp.eq.s32.totalorder %s21, 3
      %p86 = por %p84, %p85
      %p88 = scmp.ne.s32.totalorder %s73, %s87
      %p89 = scmp.eq.s32.totalorder %s21, 0
      %p90 = por %p88, %p89
      %s91 = ssub.s32 %s15, %s22
      %p92 = scmp.eq.s32.totalorder %s91, 0
      %s94 = sadd.s32 %s93, 1
      %s95 = scalar_select %p92, %s93, %s94
      %p98 = pneg %p92
      %p99 = scmp.eq.s32.totalorder %s15, 3
      %p100 = por %p98, %p99
      %p101 = scmp.ne.s32.totalorder %s93, %s96
      %p102 = scmp.eq.s32.totalorder %s15, 0
      %p103 = por %p101, %p102
      %p104 = scmp.ne.s32.totalorder %s93, %s96
      %p105 = scmp.eq.s32.totalorder %s20, 3
      %p106 = por %p104, %p105
      %p107 = scmp.ne.s32.totalorder %s96, %s97
      %p108 = scmp.eq.s32.totalorder %s20, 0
      %p109 = por %p107, %p108
      %p110 = scmp.ne.s32.totalorder %s96, %s97
      %p111 = scmp.eq.s32.totalorder %s21, 3
      %p112 = por %p110, %p111
      %p114 = scmp.ne.s32.totalorder %s97, %s113
      %p115 = scmp.eq.s32.totalorder %s21, 0
      %p116 = por %p114, %p115
      %p117 = scmp.le.s32.totalorder 1, %s15
      %p118 = scmp.lt.s32.totalorder %s15, 5
      %p119 = pnand %p117, %p118
      %p120 = pneg %p119
      // Predicated region
      $region9: #{tpu_custom_call.1} parent=5 // pred_check
        _
      $region10: #{tpu_custom_call.1} parent=5 // pred_check_branch
        %122 = sbr.rel (%p119) target = $region12
      $region11: #{tpu_custom_call.1} parent=5 // pred_region
        %s123 = ssub.s32 %s15, 1
        // Predicated region
        $region13: #{tpu_custom_call.1} parent=11 // pred_check
          %p124 = pneg %p62
        $region14: #{tpu_custom_call.1} parent=11 // pred_check_branch
          %126 = sbr.rel (%p124) target = $region16
        $region15: #{tpu_custom_call.1} parent=11 // pred_region
          _
        $region16: #{tpu_custom_call.1} parent=11 // pred_fallthru
          _
        // Predicated region
        $region17: #{tpu_custom_call.1} parent=11 // pred_check
          %p127 = pneg %p83
        $region18: #{tpu_custom_call.1} parent=11 // pred_check_branch
          %129 = sbr.rel (%p127) target = $region20
        $region19: #{tpu_custom_call.1} parent=11 // pred_region
          _
        $region20: #{tpu_custom_call.1} parent=11 // pred_fallthru
          _
      $region12: #{tpu_custom_call.1} parent=5 // pred_fallthru
        _
      %p130 = scmp.lt.s32.totalorder %s15, 4
      // Predicated region
      $region21: #{tpu_custom_call.1} parent=5 // pred_check
        %p131 = pneg %p130
      $region22: #{tpu_custom_call.1} parent=5 // pred_check_branch
        %133 = sbr.rel (%p131) target = $region24
      $region23: #{tpu_custom_call.1} parent=5 // pred_region
        // Predicated region
        $region25: #{tpu_custom_call.1} parent=23 // pred_check
          %p134 = pneg %p35
        $region26: #{tpu_custom_call.1} parent=23 // pred_check_branch
          %136 = sbr.rel (%p134) target = $region28
        $region27: #{tpu_custom_call.1} parent=23 // pred_region
          %s137 = sand.u32 %s25, 1
          %s138 = scalar_lea.sflag [#allocation3], %s137
          %s139 = sand.u32 %s25, 1
          %s140 = smul.addr %s139, 32
          %s141 = scalar_lea.vmem [#allocation2], %s140
          %s142 = smul.u32 2, %s15
          %s144 = ssub.s32 512, 512
          %145 = vsyncadd %s138, %s144
          %s146 = smul.addr %s142, 2
          %s147 = smul.addr %s146, 128
          %s148 = scalar_lea.hbm %s0, %s147
          %s149 = sshll.u32 %s141, 4
          %s150 = int_to_ptr.vmem [resolvable:$true] %s149
          %155 = dma.hbm_to_vmem [thread:$0]  %s148, 512, %s150, %s138, 128, 128, 8
        $region28: #{tpu_custom_call.1} parent=23 // pred_fallthru
          _
      $region24: #{tpu_custom_call.1} parent=5 // pred_fallthru
        _
      %p156 = scmp.le.s32.totalorder 1, %s15
      %p157 = scmp.lt.s32.totalorder %s15, 5
      %p158 = pnand %p156, %p157
      %p159 = pneg %p158
      // Predicated region
      $region29: #{tpu_custom_call.1} parent=5 // pred_check
        _
      $region30: #{tpu_custom_call.1} parent=5 // pred_check_branch
        %161 = sbr.rel (%p158) target = $region32
      $region31: #{tpu_custom_call.1} parent=5 // pred_region
        %s162 = ssub.s32 %s15, 1
        %s163 = sand.u32 %s28, 1
        %s164 = scalar_lea.sflag [#allocation3], %s163
        %s165 = sand.u32 %s28, 1
        %s166 = smul.addr %s165, 32
        %s167 = scalar_lea.vmem [#allocation2], %s166
        // Predicated region
        $region33: #{tpu_custom_call.1} parent=31 // pred_check
          %p168 = pneg %p41
        $region34: #{tpu_custom_call.1} parent=31 // pred_check_branch
          %170 = sbr.rel (%p168) target = $region36
        $region35: #{tpu_custom_call.1} parent=31 // pred_region
          %171 = dma.done %s164, 512
        $region36: #{tpu_custom_call.1} parent=31 // pred_fallthru
          _
        %s172 = sand.u32 %s28, 1
        %s173 = scalar_lea.sflag [#allocation3], %s172
        %s174 = sand.u32 %s28, 1
        %s175 = smul.addr %s174, 32
        %s176 = scalar_lea.vmem [#allocation2], %s175
        %p177 = pneg %p41
        %p178 = pneg %p38
        %p179 = pneg %p62
        %p180 = pneg %p59
        %p181 = pneg %p83
        %p182 = pneg %p80
        %p183 = pneg %p109
        %p184 = pneg %p106
        %s185 = sand.u32 %s96, 1
        %s186 = scalar_lea.sflag [#allocation4], %s185
        %s187 = sand.u32 %s96, 1
        %s188 = smul.addr %s187, 64
        %s189 = scalar_lea.vmem [#allocation5], %s188
        %s190 = smul.u32 2, %s20
        %s191 = smul.u32 2, %s20
        %v192 = vld [vmem:[%s1] sm:$0xff]
        %v193 = vld [vmem:[%s1 + $0x8] sm:$0xff]
        %v194 = vld [vmem:[%s2] sm:$0xff]
        %v195 = vld [vmem:[%s2 + $0x8] sm:$0xff]
        %v196 = vld [vmem:[%s2 + $0x10] sm:$0xff]
        %v197 = vld [vmem:[%s2 + $0x18] sm:$0xff]
        %v198 = vld [vmem:[%s167] sm:$0xff]
        %v199 = vld [vmem:[%s167 + $0x8] sm:$0xff]
        %v200 = vld [vmem:[%s167 + $0x10] sm:$0xff]
        %v201 = vld [vmem:[%s167 + $0x18] sm:$0xff]
        %vm202 = vcmask 130048
        %v204 = vsel %vm202, %v198, 0
        %v207 = vsel %vm202, %v199, 0
        %v210 = vsel %vm202, %v200, 0
        %v213 = vsel %vm202, %v201, 0
        %215 = vmatprep.subr.mxu0 0.0
        %216 = vmatpush1.msra.mxu0 0.0
        %217 = vmatprep.subr.mxu0 0.0
        %218 = vmatpush1.msra.mxu0 0.0
        %219 = vmatprep.subr.mxu0 0.0
        %220 = vmatpush1.msra.mxu0 0.0
        %221 = vmatprep.subr.mxu0 0.0
        %222 = vmatpush1.msra.mxu0 0.0
        %223 = vmatprep.subr.mxu0 0.0
        %224 = vmatpush1.msra.mxu0 0.0
        %225 = vmatprep.subr.mxu0 0.0
        %226 = vmatpush1.msra.mxu0 0.0
        %227 = vmatprep.subr.mxu0 0.0
        %228 = vmatpush1.msra.mxu0 0.0
        %229 = vmatprep.subr.mxu0 0.0
        %230 = vmatpush1.msra.mxu0 0.0
        %231 = vmatprep.subr.mxu0 0.0
        %232 = vmatpush1.msra.mxu0 0.0
        %233 = vmatprep.subr.mxu0 0.0
        %234 = vmatpush1.msra.mxu0 0.0
        %235 = vmatprep.subr.mxu0 0.0
        %236 = vmatpush1.msra.mxu0 0.0
        %237 = vmatprep.subr.mxu0 0.0
        %238 = vmatpush1.msra.mxu0 0.0
        %239 = vmatprep.subr.mxu0 0.0
        %240 = vmatpush1.msra.mxu0 0.0
        %241 = vmatprep.subr.mxu0 0.0
        %242 = vmatpush1.msra.mxu0 0.0
        %243 = vmatprep.subr.mxu0 0.0
        %244 = vmatpush1.msra.mxu0 %v193
        %245 = vmatprep.subr.mxu0 0.0
        %246 = vmatpush1.msra.mxu0 %v192
        %247 = vmatprep.subr.mxu0 0.0
        %248 = vmatpush2.msra.mxu0 0.0
        %249 = vmatprep.subr.mxu0 0.0
        %250 = vmatpush2.msra.mxu0 0.0
        %251 = vmatprep.subr.mxu0 0.0
        %252 = vmatpush2.msra.mxu0 0.0
        %253 = vmatprep.subr.mxu0 0.0
        %254 = vmatpush2.msra.mxu0 0.0
        %255 = vmatprep.subr.mxu0 0.0
        %256 = vmatpush2.msra.mxu0 0.0
        %257 = vmatprep.subr.mxu0 0.0
        %258 = vmatpush2.msra.mxu0 0.0
        %259 = vmatprep.subr.mxu0 0.0
        %260 = vmatpush2.msra.mxu0 0.0
        %261 = vmatprep.subr.mxu0 0.0
        %262 = vmatpush2.msra.mxu0 0.0
        %263 = vmatprep.subr.mxu0 0.0
        %264 = vmatpush2.msra.mxu0 0.0
        %265 = vmatprep.subr.mxu0 0.0
        %266 = vmatpush2.msra.mxu0 0.0
        %267 = vmatprep.subr.mxu0 0.0
        %268 = vmatpush2.msra.mxu0 0.0
        %269 = vmatprep.subr.mxu0 0.0
        %270 = vmatpush2.msra.mxu0 0.0
        %271 = vmatprep.subr.mxu0 0.0
        %272 = vmatpush2.msra.mxu0 0.0
        %273 = vmatprep.subr.mxu0 0.0
        %274 = vmatpush2.msra.mxu0 0.0
        %275 = vmatprep.subr.mxu0 0.0
        %276 = vmatpush2.msra.mxu0 0.0
        %277 = vmatprep.subr.mxu0 0.0
        %278 = vmatpush2.msra.mxu0 0.0
        %279 = vmatprep.mubr.f32.mxu0 0.0
        %280 = vmatmul.mubr.f32.gmra.mxu0 %v204
        %v281 = vpop.f32.mrf.mxu0
        %v282 = vadd.f32 0.0, %v281
        %v283 = vpop.f32.mrf.mxu0
        %284 = vmatprep.mubr.f32.mxu0 0.0
        %285 = vmatmul.mubr.f32.gmra.mxu0 %v207
        %v286 = vpop.f32.mrf.mxu0
        %v287 = vadd.f32 0.0, %v286
        %v288 = vpop.f32.mrf.mxu0
        %289 = vmatprep.mubr.f32.mxu0 0.0
        %290 = vmatmul.mubr.f32.gmra.mxu0 %v210
        %v291 = vpop.f32.mrf.mxu0
        %v292 = vadd.f32 0.0, %v291
        %v293 = vpop.f32.mrf.mxu0
        %294 = vmatprep.mubr.f32.mxu0 0.0
        %295 = vmatmul.mubr.f32.gmra.mxu0 %v213
        %v296 = vpop.f32.mrf.mxu0
        %v297 = vadd.f32 0.0, %v296
        %v298 = vpop.f32.mrf.mxu0
        %299 = vdwg.mxu0
        %v301 = vsel %vm202, %v194, 0
        %v304 = vsel %vm202, %v195, 0
        %v307 = vsel %vm202, %v196, 0
        %v310 = vsel %vm202, %v197, 0
        %312 = vmatprep.subr.mxu0 0.0
        %313 = vmatpush1.msra.mxu0 0.0
        %314 = vmatprep.subr.mxu0 0.0
        %315 = vmatpush1.msra.mxu0 0.0
        %316 = vmatprep.subr.mxu0 0.0
        %317 = vmatpush1.msra.mxu0 0.0
        %318 = vmatprep.subr.mxu0 0.0
        %319 = vmatpush1.msra.mxu0 0.0
        %320 = vmatprep.subr.mxu0 0.0
        %321 = vmatpush1.msra.mxu0 0.0
        %322 = vmatprep.subr.mxu0 0.0
        %323 = vmatpush1.msra.mxu0 0.0
        %324 = vmatprep.subr.mxu0 0.0
        %325 = vmatpush1.msra.mxu0 0.0
        %326 = vmatprep.subr.mxu0 0.0
        %327 = vmatpush1.msra.mxu0 0.0
        %328 = vmatprep.subr.mxu0 0.0
        %329 = vmatpush1.msra.mxu0 0.0
        %330 = vmatprep.subr.mxu0 0.0
        %331 = vmatpush1.msra.mxu0 0.0
        %332 = vmatprep.subr.mxu0 0.0
        %333 = vmatpush1.msra.mxu0 0.0
        %334 = vmatprep.subr.mxu0 0.0
        %335 = vmatpush1.msra.mxu0 0.0
        %336 = vmatprep.subr.mxu0 0.0
        %337 = vmatpush1.msra.mxu0 0.0
        %338 = vmatprep.subr.mxu0 0.0
        %339 = vmatpush1.msra.mxu0 0.0
        %340 = vmatprep.subr.mxu0 0.0
        %341 = vmatpush1.msra.mxu0 %v287
        %342 = vmatprep.subr.mxu0 0.0
        %343 = vmatpush1.msra.mxu0 %v282
        %344 = vmatprep.subr.mxu0 0.0
        %345 = vmatpush2.msra.mxu0 0.0
        %346 = vmatprep.subr.mxu0 0.0
        %347 = vmatpush2.msra.mxu0 0.0
        %348 = vmatprep.subr.mxu0 0.0
        %349 = vmatpush2.msra.mxu0 0.0
        %350 = vmatprep.subr.mxu0 0.0
        %351 = vmatpush2.msra.mxu0 0.0
        %352 = vmatprep.subr.mxu0 0.0
        %353 = vmatpush2.msra.mxu0 0.0
        %354 = vmatprep.subr.mxu0 0.0
        %355 = vmatpush2.msra.mxu0 0.0
        %356 = vmatprep.subr.mxu0 0.0
        %357 = vmatpush2.msra.mxu0 0.0
        %358 = vmatprep.subr.mxu0 0.0
        %359 = vmatpush2.msra.mxu0 0.0
        %360 = vmatprep.subr.mxu0 0.0
        %361 = vmatpush2.msra.mxu0 0.0
        %362 = vmatprep.subr.mxu0 0.0
        %363 = vmatpush2.msra.mxu0 0.0
        %364 = vmatprep.subr.mxu0 0.0
        %365 = vmatpush2.msra.mxu0 0.0
        %366 = vmatprep.subr.mxu0 0.0
        %367 = vmatpush2.msra.mxu0 0.0
        %368 = vmatprep.subr.mxu0 0.0
        %369 = vmatpush2.msra.mxu0 0.0
        %370 = vmatprep.subr.mxu0 0.0
        %371 = vmatpush2.msra.mxu0 0.0
        %372 = vmatprep.subr.mxu0 0.0
        %373 = vmatpush2.msra.mxu0 0.0
        %374 = vmatprep.subr.mxu0 0.0
        %375 = vmatpush2.msra.mxu0 0.0
        %376 = vmatprep.mubr.f32.mxu0 0.0
        %377 = vmatmul.mubr.f32.gmra.mxu0 %v301
        %v378 = vpop.f32.mrf.mxu0
        %v379 = vadd.f32 0.0, %v378
        %v380 = vpop.f32.mrf.mxu0
        %381 = vmatprep.mubr.f32.mxu0 0.0
        %382 = vmatmul.mubr.f32.gmra.mxu0 %v304
        %v383 = vpop.f32.mrf.mxu0
        %v384 = vadd.f32 0.0, %v383
        %v385 = vpop.f32.mrf.mxu0
        %386 = vmatprep.mubr.f32.mxu0 0.0
        %387 = vmatmul.mubr.f32.gmra.mxu0 %v307
        %v388 = vpop.f32.mrf.mxu0
        %v389 = vadd.f32 0.0, %v388
        %v390 = vpop.f32.mrf.mxu0
        %391 = vmatprep.mubr.f32.mxu0 0.0
        %392 = vmatmul.mubr.f32.gmra.mxu0 %v310
        %v393 = vpop.f32.mrf.mxu0
        %v394 = vadd.f32 0.0, %v393
        %v395 = vpop.f32.mrf.mxu0
        %396 = vdwg.mxu0
        %vm397 = vcmask 261120
        %398 = vst.msk [vmem:[%s189] sm:$0xff] %vm397, %v379
        %399 = vst.msk [vmem:[%s189 + $0x8] sm:$0xff] %vm397, %v384
        %400 = vst.msk [vmem:[%s189 + $0x10] sm:$0xff] %vm397, %v389
        %401 = vst.msk [vmem:[%s189 + $0x18] sm:$0xff] %vm397, %v394
        %402 = vmatprep.subr.mxu0 0.0
        %403 = vmatpush1.msra.mxu0 0.0
        %404 = vmatprep.subr.mxu0 0.0
        %405 = vmatpush1.msra.mxu0 0.0
        %406 = vmatprep.subr.mxu0 0.0
        %407 = vmatpush1.msra.mxu0 0.0
        %408 = vmatprep.subr.mxu0 0.0
        %409 = vmatpush1.msra.mxu0 0.0
        %410 = vmatprep.subr.mxu0 0.0
        %411 = vmatpush1.msra.mxu0 0.0
        %412 = vmatprep.subr.mxu0 0.0
        %413 = vmatpush1.msra.mxu0 0.0
        %414 = vmatprep.subr.mxu0 0.0
        %415 = vmatpush1.msra.mxu0 0.0
        %416 = vmatprep.subr.mxu0 0.0
        %417 = vmatpush1.msra.mxu0 0.0
        %418 = vmatprep.subr.mxu0 0.0
        %419 = vmatpush1.msra.mxu0 0.0
        %420 = vmatprep.subr.mxu0 0.0
        %421 = vmatpush1.msra.mxu0 0.0
        %422 = vmatprep.subr.mxu0 0.0
        %423 = vmatpush1.msra.mxu0 0.0
        %424 = vmatprep.subr.mxu0 0.0
        %425 = vmatpush1.msra.mxu0 0.0
        %426 = vmatprep.subr.mxu0 0.0
        %427 = vmatpush1.msra.mxu0 0.0
        %428 = vmatprep.subr.mxu0 0.0
        %429 = vmatpush1.msra.mxu0 0.0
        %430 = vmatprep.subr.mxu0 0.0
        %431 = vmatpush1.msra.mxu0 %v297
        %432 = vmatprep.subr.mxu0 0.0
        %433 = vmatpush1.msra.mxu0 %v292
        %434 = vmatprep.subr.mxu0 0.0
        %435 = vmatpush2.msra.mxu0 0.0
        %436 = vmatprep.subr.mxu0 0.0
        %437 = vmatpush2.msra.mxu0 0.0
        %438 = vmatprep.subr.mxu0 0.0
        %439 = vmatpush2.msra.mxu0 0.0
        %440 = vmatprep.subr.mxu0 0.0
        %441 = vmatpush2.msra.mxu0 0.0
        %442 = vmatprep.subr.mxu0 0.0
        %443 = vmatpush2.msra.mxu0 0.0
        %444 = vmatprep.subr.mxu0 0.0
        %445 = vmatpush2.msra.mxu0 0.0
        %446 = vmatprep.subr.mxu0 0.0
        %447 = vmatpush2.msra.mxu0 0.0
        %448 = vmatprep.subr.mxu0 0.0
        %449 = vmatpush2.msra.mxu0 0.0
        %450 = vmatprep.subr.mxu0 0.0
        %451 = vmatpush2.msra.mxu0 0.0
        %452 = vmatprep.subr.mxu0 0.0
        %453 = vmatpush2.msra.mxu0 0.0
        %454 = vmatprep.subr.mxu0 0.0
        %455 = vmatpush2.msra.mxu0 0.0
        %456 = vmatprep.subr.mxu0 0.0
        %457 = vmatpush2.msra.mxu0 0.0
        %458 = vmatprep.subr.mxu0 0.0
        %459 = vmatpush2.msra.mxu0 0.0
        %460 = vmatprep.subr.mxu0 0.0
        %461 = vmatpush2.msra.mxu0 0.0
        %462 = vmatprep.subr.mxu0 0.0
        %463 = vmatpush2.msra.mxu0 0.0
        %464 = vmatprep.subr.mxu0 0.0
        %465 = vmatpush2.msra.mxu0 0.0
        %466 = vmatprep.mubr.f32.mxu0 0.0
        %467 = vmatmul.mubr.f32.gmra.mxu0 %v301
        %v468 = vpop.f32.mrf.mxu0
        %v469 = vadd.f32 0.0, %v468
        %v470 = vpop.f32.mrf.mxu0
        %471 = vmatprep.mubr.f32.mxu0 0.0
        %472 = vmatmul.mubr.f32.gmra.mxu0 %v304
        %v473 = vpop.f32.mrf.mxu0
        %v474 = vadd.f32 0.0, %v473
        %v475 = vpop.f32.mrf.mxu0
        %476 = vmatprep.mubr.f32.mxu0 0.0
        %477 = vmatmul.mubr.f32.gmra.mxu0 %v307
        %v478 = vpop.f32.mrf.mxu0
        %v479 = vadd.f32 0.0, %v478
        %v480 = vpop.f32.mrf.mxu0
        %481 = vmatprep.mubr.f32.mxu0 0.0
        %482 = vmatmul.mubr.f32.gmra.mxu0 %v310
        %v483 = vpop.f32.mrf.mxu0
        %v484 = vadd.f32 0.0, %v483
        %v485 = vpop.f32.mrf.mxu0
        %486 = vdwg.mxu0
        %s487 = scalar_lea.vmem %s189, 32 [#allocation5]
        %488 = vst.msk [vmem:[%s487] sm:$0xff] %vm397, %v469
        %489 = vst.msk [vmem:[%s487 + $0x8] sm:$0xff] %vm397, %v474
        %490 = vst.msk [vmem:[%s487 + $0x10] sm:$0xff] %vm397, %v479
        %491 = vst.msk [vmem:[%s487 + $0x18] sm:$0xff] %vm397, %v484
        %s492 = sand.u32 %s96, 1
        %s493 = scalar_lea.sflag [#allocation4], %s492
        %s494 = sand.u32 %s96, 1
        %s495 = smul.addr %s494, 64
        %s496 = scalar_lea.vmem [#allocation5], %s495
        // Predicated region
        $region37: #{tpu_custom_call.1} parent=31 // pred_check
          %p497 = pneg %p106
        $region38: #{tpu_custom_call.1} parent=31 // pred_check_branch
          %499 = sbr.rel (%p497) target = $region40
        $region39: #{tpu_custom_call.1} parent=31 // pred_region
          %s500 = smul.u32 2, %s20
          %s502 = ssub.s32 1024, 1024
          %503 = vsyncadd %s493, %s502
          %s504 = smul.addr %s500, 4
          %s505 = smul.addr %s504, 128
          %s506 = scalar_lea.hbm %s3, %s505
          %s507 = sshll.u32 %s496, 4
          %s508 = int_to_ptr.vmem [resolvable:$true] %s507
          %513 = dma.vmem_to_hbm [thread:$0]  %s508, 1024, %s506, %s493, 128, 128, 8
        $region40: #{tpu_custom_call.1} parent=31 // pred_fallthru
          _
      $region32: #{tpu_custom_call.1} parent=5 // pred_fallthru
        _
      %p514 = scmp.le.s32.totalorder 2, %s15
      // Predicated region
      $region41: #{tpu_custom_call.1} parent=5 // pred_check
        %p515 = pneg %p514
      $region42: #{tpu_custom_call.1} parent=5 // pred_check_branch
        %517 = sbr.rel (%p515) target = $region44
      $region43: #{tpu_custom_call.1} parent=5 // pred_region
        %s518 = ssub.s32 %s15, 2
        // Predicated region
        $region45: #{tpu_custom_call.1} parent=43 // pred_check
          %p519 = pneg %p112
        $region46: #{tpu_custom_call.1} parent=43 // pred_check_branch
          %521 = sbr.rel (%p519) target = $region48
        $region47: #{tpu_custom_call.1} parent=43 // pred_region
          %s522 = sand.u32 %s97, 1
          %s523 = scalar_lea.sflag [#allocation4], %s522
          %s524 = sand.u32 %s97, 1
          %s525 = smul.addr %s524, 64
          %s526 = scalar_lea.vmem [#allocation5], %s525
          %527 = dma.done %s523, 1024
        $region48: #{tpu_custom_call.1} parent=43 // pred_fallthru
          _
      $region44: #{tpu_custom_call.1} parent=5 // pred_fallthru
        _
    $region6: #{tpu_custom_call.1} parent=1 // loop_footer
      %s19 = sadd.s32 1, %s15
    $region7: #{tpu_custom_call.1} parent=1 // loop_footer_branch
      %14 = sbr.rel target = $region3
    $region8: #{tpu_custom_call.1} parent=1 // loop_exit
      _
    %528 = vsyncpa [#allocation3], 1
    %s529 = scalar_lea.sflag [#allocation3], 1
    %530 = vsyncpa %s529, 1
    %531 = vsyncpa [#allocation4], 1
    %s532 = scalar_lea.sflag [#allocation4], 1
    %533 = vsyncpa %s532, 1

</llo_original>
